<compile_context>
chip_gen: v5e
topology: v5e:2x2
jax: 0.10.0
libtpu: 0.0.40
codegen_flags: <defaults>
</compile_context>

<pallas_src>
import jax
import jax.numpy as jnp
from jax import lax
from jax.experimental import pallas as pl
from jax.experimental.pallas import tpu as pltpu

LANES = 128
SUBLANES = 8
LOGITS = "logits"


def _round_down(x: int, m: int) -> int:
    return (x // m) * m


def _tpu_layout_params():
    """(num_tensorcores, block_rows_max for f32) for the local device (defensive)."""
    num_cores = 1
    block_rows_max = 2048          # 1 MiB/f32 input buffer: ~86%+ HBM roofline on v5e/v6e
    try:
        kind = jax.devices()[0].device_kind.lower()
    except Exception:
        kind = ""
    if "v4" in kind or "v7" in kind:   # megacore (v4) / 2 TCs per chip (v7x)
        num_cores = 2
    if "v7" in kind:
        block_rows_max = 4096          # ~3.2 TB/s HBM: keep per-step DMA >> ~0.35us step cost
    return num_cores, block_rows_max


def _make_rmse_kernel(block_rows: int, per_core: int, n_rows: int, multi_core: bool):
    groups = block_rows // SUBLANES  # block_rows is always a multiple of 8

    def kernel(x_ref, y_ref, o_ref, acc_ref):
        if multi_core:
            c = pl.program_id(0)                 # core-split ("parallel") axis
            j = pl.program_id(1)                 # sequential reduction axis
            j_last = pl.num_programs(1) - 1
        else:
            c = 0
            j = pl.program_id(0)
            j_last = pl.num_programs(0) - 1

        @pl.when(j == 0)
        def _init():
            acc_ref[...] = jnp.zeros_like(acc_ref)

        d = x_ref[...].astype(jnp.float32) - y_ref[...].astype(jnp.float32)
        dd = d * d

        blk = c * per_core + j                      # logical (unclamped) block index
        is_full = (blk + 1) * block_rows <= n_rows  # block entirely inside the array?

        @pl.when(is_full)
        def _steady():
            # Group-of-8-row retiling stays on (8,128) vreg tile boundaries;
            # the axis-0 sum is pure VPU elementwise adds (no XLU, no mask).
            acc_ref[...] += dd.reshape(groups, SUBLANES, LANES).sum(axis=0)

        @pl.when(jnp.logical_not(is_full))
        def _ragged():
            # Tail block (or fully-clamped surplus block): mask rows past the
            # logical end; clamped re-reads therefore contribute exactly 0.
            row = lax.broadcasted_iota(jnp.int32, dd.shape, 0) + blk * block_rows
            masked = jnp.where(row < n_rows, dd, 0.0)
            acc_ref[...] += masked.reshape(groups, SUBLANES, LANES).sum(axis=0)

        @pl.when(j == j_last)
        def _finalize():
            # Lane-dense (1, 8, 128) partial output; cross-lane reduce happens
            # in the tiny JAX epilogue.
            o_ref[...] = acc_ref[...].reshape(o_ref.shape)

    return kernel


def _sum_sq_diff_pallas(x2d, y2d, rows: int, block_rows: int, num_cores: int):
    """Sum of squared differences of two (rows, 128) slabs via Pallas."""
    blocks_total = -(-rows // block_rows)
    multi_core = (num_cores > 1) and (blocks_total >= num_cores)

    if multi_core:
        per_core = -(-blocks_total // num_cores)
        grid = (num_cores, per_core)

        def in_map(c, j):
            # Clamp keeps the DMA in-bounds; the kernel masks by the logical
            # (unclamped) block index, so clamped re-reads contribute 0.
            return (jnp.minimum(c * per_core + j, blocks_total - 1), 0)

        out_map = lambda c, j: (c, 0, 0)
        dims = ("parallel", "arbitrary")
        n_out = num_cores
    else:
        per_core = blocks_total
        grid = (blocks_total,)
        in_map = lambda j: (j, 0)
        out_map = lambda j: (0, 0, 0)
        dims = ("arbitrary",)
        n_out = 1

    cost = pl.CostEstimate(
        flops=3 * rows * LANES,            # sub + mul + add per element
        transcendentals=0,
        bytes_accessed=rows * LANES * (x2d.dtype.itemsize + y2d.dtype.itemsize),
    )

    partials = pl.pallas_call(
        _make_rmse_kernel(block_rows, per_core, rows, multi_core),
        out_shape=jax.ShapeDtypeStruct((n_out, SUBLANES, LANES), jnp.float32),
        grid_spec=pltpu.PrefetchScalarGridSpec(
            num_scalar_prefetch=0,
            grid=grid,
            in_specs=[
                pl.BlockSpec((block_rows, LANES), in_map),
                pl.BlockSpec((block_rows, LANES), in_map),
            ],
            out_specs=pl.BlockSpec((1, SUBLANES, LANES), out_map),
            scratch_shapes=[pltpu.VMEM((SUBLANES, LANES), jnp.float32)],
        ),
        compiler_params=pltpu.CompilerParams(dimension_semantics=dims),
        cost_estimate=cost,
    )(x2d, y2d)

    return jnp.sum(partials)   # tiny epilogue reduce (n_out * 8 * 128 floats)


def rmse_loss(inputs, target) -> jax.Array:
    """sqrt(mean((inputs - target)**2)) over all elements -> float32 scalar.

    Matches torch.sqrt(nn.MSELoss()(input, target)) with default reduction='mean'.
    """
    # LogitsLoss behavior: unwrap logits if a dict is passed.
    if isinstance(inputs, dict) and LOGITS in inputs:
        inputs = inputs[LOGITS]
    assert inputs.shape == target.shape, "broadcasting not supported (matches default use)"

    n_total = inputs.size
    flat_x = inputs.reshape(-1)
    flat_y = target.reshape(-1)

    n_aligned = (n_total // LANES) * LANES
    rows = n_aligned // LANES

    if rows < SUBLANES:
        # Sub-1 KiB input: not worth a kernel launch; identical math in JAX.
        d = flat_x.astype(jnp.float32) - flat_y.astype(jnp.float32)
        return jnp.sqrt(jnp.sum(d * d) / n_total)

    num_cores, block_rows_max = _tpu_layout_params()
    # Keep per-step HBM bytes ~constant across dtypes (bf16/f16/int8 -> 2-4x rows).
    itemsize = max(int(inputs.dtype.itemsize), int(target.dtype.itemsize))
    block_rows_cap = block_rows_max * max(1, 4 // itemsize)

    # block_rows: multiple of 8 and never larger than the array, so every grid
    # step is either a full block or a standard partial edge block.
    block_rows = min(block_rows_cap, _round_down(rows, SUBLANES))

    # 128-aligned prefix streamed by the kernel.  When n_total % 128 == 0
    # (the common case) this is a free reshape -- no host-side copy, no jnp.pad.
    x_main = flat_x if n_aligned == n_total else flat_x[:n_aligned]
    y_main = flat_y if n_aligned == n_total else flat_y[:n_aligned]
    x2d = x_main.reshape(rows, LANES)
    y2d = y_main.reshape(rows, LANES)

    total_sq = _sum_sq_diff_pallas(x2d, y2d, rows, block_rows, num_cores)

    if n_aligned != n_total:
        # <128-element ragged tail: tiny JAX epilogue instead of padding copies.
        dt = flat_x[n_aligned:].astype(jnp.float32) - flat_y[n_aligned:].astype(jnp.float32)
        total_sq = total_sq + jnp.sum(dt * dt)

    return jnp.sqrt(total_sq / n_total)


def _ref_rmse(x, y):
    d = x.astype(jnp.float32) - y.astype(jnp.float32)
    return jnp.sqrt(jnp.mean(d * d))


if __name__ == "__main__":
    key = jax.random.PRNGKey(0)

    # Primary example consistent with the module's typical use (NCHW-like).
    k1, k2, k3, k4, k5, k6 = jax.random.split(key, 6)
    x = jax.random.normal(k1, (2, 4, 16, 16), dtype=jnp.float32)
    y = jax.random.normal(k2, (2, 4, 16, 16), dtype=jnp.float32)
    loss = rmse_loss(x, y)
    jax.block_until_ready(loss)
    assert jnp.allclose(loss, _ref_rmse(x, y), rtol=1e-5, atol=1e-6), (loss, _ref_rmse(x, y))

    # Ragged shape: exercises the partial-block masked path + JAX tail epilogue.
    xr = jax.random.normal(k3, (37, 50), dtype=jnp.float32)
    yr = jax.random.normal(k4, (37, 50), dtype=jnp.float32)
    loss_r = rmse_loss(xr, yr)
    jax.block_until_ready(loss_r)
    assert jnp.allclose(loss_r, _ref_rmse(xr, yr), rtol=1e-5, atol=1e-6), (loss_r, _ref_rmse(xr, yr))

    # Narrow dtype: exercises in-kernel f32 upcast and dtype-scaled tiling.
    xb = jax.random.normal(k5, (2, 8, 64), dtype=jnp.bfloat16)
    yb = jax.random.normal(k6, (2, 8, 64), dtype=jnp.bfloat16)
    loss_b = rmse_loss(xb, yb)
    jax.block_until_ready(loss_b)
    assert jnp.allclose(loss_b, _ref_rmse(xb, yb), rtol=1e-4, atol=1e-5), (loss_b, _ref_rmse(xb, yb))

    print("KERNEL_OK")
</pallas_src>

<mosaic_0001>
module attributes {stable_mosaic.version = 11 : i64} {
  func.func @kernel(%arg0: i32, %arg1: memref<16x128xf32, #tpu.memory_space<vmem>>, %arg2: memref<16x128xf32, #tpu.memory_space<vmem>>, %arg3: memref<1x8x128xf32, #tpu.memory_space<vmem>>, %arg4: memref<8x128xf32, #tpu.memory_space<vmem>>) attributes {dimension_semantics = [#tpu.dimension_semantics<arbitrary>], iteration_bounds = array<i64: 1>, scalar_prefetch = 0 : i64, scratch_operands = 1 : i64, tpu.core_type = #tpu.core_type<tc>, window_params = [{transform_indices = @transform_0, window_bounds = array<i64: 16, 128>}, {transform_indices = @transform_1, window_bounds = array<i64: 16, 128>}, {pipeline_mode = #tpu.pipeline_mode<synchronous>, transform_indices = @transform_2, window_bounds = array<i64: 1, 8, 128>}]} {
    %c0_i32 = arith.constant 0 : i32
    %0 = arith.cmpi eq, %arg0, %c0_i32 : i32
    %1 = arith.extui %0 : i1 to i32
    %c0_i32_0 = arith.constant 0 : i32
    %2 = arith.cmpi ne, %1, %c0_i32_0 : i32
    scf.if %2 {
      %cst = arith.constant 0.000000e+00 : f32
      %19 = vector.broadcast %cst : f32 to vector<8x128xf32>
      %c0_10 = arith.constant 0 : index
      %c0_11 = arith.constant 0 : index
      %20 = vector.load %arg4[%c0_10, %c0_11] : memref<8x128xf32, #tpu.memory_space<vmem>>, vector<8x128xf32>
      tpu.vector_store %arg4[%c0_10, %c0_11], %19 {strides = array<i32>} : memref<8x128xf32, #tpu.memory_space<vmem>>, vector<8x128xf32>,
    } else {
    }
    %c0 = arith.constant 0 : index
    %c0_1 = arith.constant 0 : index
    %3 = vector.load %arg1[%c0, %c0_1] : memref<16x128xf32, #tpu.memory_space<vmem>>, vector<16x128xf32>
    %c0_2 = arith.constant 0 : index
    %c0_3 = arith.constant 0 : index
    %4 = vector.load %arg2[%c0_2, %c0_3] : memref<16x128xf32, #tpu.memory_space<vmem>>, vector<16x128xf32>
    %5 = arith.subf %3, %4 : vector<16x128xf32>
    %6 = arith.mulf %5, %5 : vector<16x128xf32>
    %c0_i32_4 = arith.constant 0 : i32
    %7 = arith.addi %c0_i32_4, %arg0 : i32
    %c1_i32 = arith.constant 1 : i32
    %8 = arith.addi %7, %c1_i32 : i32
    %c16_i32 = arith.constant 16 : i32
    %9 = arith.muli %8, %c16_i32 : i32
    %c16_i32_5 = arith.constant 16 : i32
    %10 = arith.cmpi sle, %9, %c16_i32_5 : i32
    %11 = arith.extui %10 : i1 to i32
    %c0_i32_6 = arith.constant 0 : i32
    %12 = arith.cmpi ne, %11, %c0_i32_6 : i32
    scf.if %12 {
      %c0_10 = arith.constant 0 : index
      %c0_11 = arith.constant 0 : index
      %19 = vector.load %arg4[%c0_10, %c0_11] : memref<8x128xf32, #tpu.memory_space<vmem>>, vector<8x128xf32>
      %20 = vector.shape_cast %6 : vector<16x128xf32> to vector<2x8x128xf32>
      %cst = arith.constant dense<0.000000e+00> : vector<8x128xf32>
      %21 = vector.multi_reduction <add>, %20, %cst [0] : vector<2x8x128xf32> to vector<8x128xf32>
      %22 = arith.addf %19, %21 : vector<8x128xf32>
      %c0_12 = arith.constant 0 : index
      %c0_13 = arith.constant 0 : index
      %23 = vector.load %arg4[%c0_12, %c0_13] : memref<8x128xf32, #tpu.memory_space<vmem>>, vector<8x128xf32>
      tpu.vector_store %arg4[%c0_12, %c0_13], %22 {strides = array<i32>} : memref<8x128xf32, #tpu.memory_space<vmem>>, vector<8x128xf32>,
    } else {
    }
    %true = arith.constant true
    %13 = arith.xori %10, %true : i1
    %14 = arith.extui %13 : i1 to i32
    %c0_i32_7 = arith.constant 0 : i32
    %15 = arith.cmpi ne, %14, %c0_i32_7 : i32
    scf.if %15 {
      %19 = tpu.iota {dimensions = array<i32: 0>} : vector<16x128xi32>
      %c16_i32_10 = arith.constant 16 : i32
      %20 = arith.muli %7, %c16_i32_10 : i32
      %21 = vector.broadcast %20 : i32 to vector<16x128xi32>
      %22 = arith.addi %19, %21 : vector<16x128xi32>
      %c16_i32_11 = arith.constant 16 : i32
      %23 = vector.broadcast %c16_i32_11 : i32 to vector<16x128xi32>
      %24 = arith.cmpi slt, %22, %23 : vector<16x128xi32>
      %cst = arith.constant 0.000000e+00 : f32
      %25 = vector.broadcast %cst : f32 to vector<16x128xf32>
      %26 = arith.select %24, %6, %25 : vector<16x128xi1>, vector<16x128xf32>
      %c0_12 = arith.constant 0 : index
      %c0_13 = arith.constant 0 : index
      %27 = vector.load %arg4[%c0_12, %c0_13] : memref<8x128xf32, #tpu.memory_space<vmem>>, vector<8x128xf32>
      %28 = vector.shape_cast %26 : vector<16x128xf32> to vector<2x8x128xf32>
      %cst_14 = arith.constant dense<0.000000e+00> : vector<8x128xf32>
      %29 = vector.multi_reduction <add>, %28, %cst_14 [0] : vector<2x8x128xf32> to vector<8x128xf32>
      %30 = arith.addf %27, %29 : vector<8x128xf32>
      %c0_15 = arith.constant 0 : index
      %c0_16 = arith.constant 0 : index
      %31 = vector.load %arg4[%c0_15, %c0_16] : memref<8x128xf32, #tpu.memory_space<vmem>>, vector<8x128xf32>
      tpu.vector_store %arg4[%c0_15, %c0_16], %30 {strides = array<i32>} : memref<8x128xf32, #tpu.memory_space<vmem>>, vector<8x128xf32>,
    } else {
    }
    %c0_i32_8 = arith.constant 0 : i32
    %16 = arith.cmpi eq, %arg0, %c0_i32_8 : i32
    %17 = arith.extui %16 : i1 to i32
    %c0_i32_9 = arith.constant 0 : i32
    %18 = arith.cmpi ne, %17, %c0_i32_9 : i32
    scf.if %18 {
      %c0_10 = arith.constant 0 : index
      %c0_11 = arith.constant 0 : index
      %19 = vector.load %arg4[%c0_10, %c0_11] : memref<8x128xf32, #tpu.memory_space<vmem>>, vector<8x128xf32>
      %20 = vector.shape_cast %19 : vector<8x128xf32> to vector<1x8x128xf32>
      %c0_12 = arith.constant 0 : index
      %c0_13 = arith.constant 0 : index
      %c0_14 = arith.constant 0 : index
      %21 = vector.load %arg3[%c0_12, %c0_13, %c0_14] : memref<1x8x128xf32, #tpu.memory_space<vmem>>, vector<1x8x128xf32>
      tpu.vector_store %arg3[%c0_12, %c0_13, %c0_14], %20 {strides = array<i32>} : memref<1x8x128xf32, #tpu.memory_space<vmem>>, vector<1x8x128xf32>,
    } else {
    }
    return
  }
  func.func @transform_0(%arg0: i32) -> (i32, i32) {
    %c0_i32 = arith.constant 0 : i32
    %c0_i32_0 = arith.constant 0 : i32
    return %arg0, %c0_i32 : i32, i32
  }
  func.func @transform_1(%arg0: i32) -> (i32, i32) {
    %c0_i32 = arith.constant 0 : i32
    %c0_i32_0 = arith.constant 0 : i32
    return %arg0, %c0_i32 : i32, i32
  }
  func.func @transform_2(%arg0: i32) -> (i32, i32, i32) {
    %c0_i32 = arith.constant 0 : i32
    %c0_i32_0 = arith.constant 0 : i32
    %c0_i32_1 = arith.constant 0 : i32
    %c0_i32_2 = arith.constant 0 : i32
    return %c0_i32, %c0_i32_0, %c0_i32_1 : i32, i32, i32
  }
}

</mosaic_0001>

<llo_original>
// kernel: tpu_custom_call.1
$region0: #{tpu_custom_call.1}
  #allocation0 [shape = 'u32[]', space=smem, size = 0x4, offset = 0x4, fixed_abs, tag = 'smem constant byte address 0x4 - core index']
  #allocation1 [shape = 'u32[72,128]{1,0:T(1,128)}', space=vmem, size = 0x9000, scoped, tag = 'internal scratch']
  #allocation2 [shape = 'f32[8,128]{1,0:T(8,128)}', space=vmem, size = 0x1000, scoped, tag = 'scratch operand']
  %s0 = inlined_call_operand.hbm [shape: f32[16,128], index: 0, kind: input, shape index: {}]
  %s1 = inlined_call_operand.hbm [shape: f32[16,128], index: 1, kind: input, shape index: {}]
  %s2 = inlined_call_operand.hbm [shape: f32[1,8,128], index: 2, kind: output, shape index: {}]
  %s3 = sld [smem:[#allocation0]]
  $region42: #{tpu_custom_call.1} parent=0
    _
  %s5 = ssub.s32 1, %s3
  %s6 = scalar_select 0, %s5, %s3
  $region1: #{tpu_custom_call.1} parent=0
    #allocation3 [shape = 'u8[8192]{0}', space=vmem, size = 0x2000, scoped, tag = 'input window, operand 0, single buffered']
    #allocation4 [shape = 's32[1]{0}', space=sflag, size = 0x4, scoped, tag = 'scoped memory for tpu_custom_call.1']
    #allocation5 [shape = 's32[1]{0}', space=sflag, size = 0x4, scoped, tag = 'scoped memory for tpu_custom_call.1']
    #allocation6 [shape = 'u8[8192]{0}', space=vmem, size = 0x2000, scoped, tag = 'input window, operand 1, single buffered']
    #allocation7 [shape = 's32[1]{0}', space=sflag, size = 0x4, scoped, tag = 'scoped memory for tpu_custom_call.1']
    #allocation8 [shape = 'u8[4096]{0}', space=vmem, size = 0x1000, scoped, tag = 'output window, operand 0, single buffered']
    %7 = vsyncpa [#allocation4], 0
    %8 = vsyncpa [#allocation7], 0
    %9 = vsyncpa [#allocation5], 0
    // Predicated region
    $region2: #{tpu_custom_call.1} parent=1 // pred_check
      _
    $region3: #{tpu_custom_call.1} parent=1 // pred_check_branch
      %11 = sbr.rel (0) target = $region5
    $region4: #{tpu_custom_call.1} parent=1 // pred_region
      %13 = vsyncadd [#allocation4], 0
      %s14 = sshll.u32 %s0, 4
      %s15 = int_to_ptr.hbm [resolvable:$true] %s14
      %s16 = sshll.u32 [#allocation3], 4
      %s17 = int_to_ptr.vmem [resolvable:$true] %s16
      %22 = dma.hbm_to_vmem [thread:$0]  %s15, 256, %s17, [#allocation4], 128, 128, 8
    $region5: #{tpu_custom_call.1} parent=1 // pred_fallthru
      _
    // Predicated region
    $region6: #{tpu_custom_call.1} parent=1 // pred_check
      _
    $region7: #{tpu_custom_call.1} parent=1 // pred_check_branch
      %24 = sbr.rel (0) target = $region9
    $region8: #{tpu_custom_call.1} parent=1 // pred_region
      %26 = vsyncadd [#allocation7], 0
      %s27 = sshll.u32 %s1, 4
      %s28 = int_to_ptr.hbm [resolvable:$true] %s27
      %s29 = sshll.u32 [#allocation6], 4
      %s30 = int_to_ptr.vmem [resolvable:$true] %s29
      %35 = dma.hbm_to_vmem [thread:$0]  %s28, 256, %s30, [#allocation7], 128, 128, 8
    $region9: #{tpu_custom_call.1} parent=1 // pred_fallthru
      _
    // Predicated region
    $region10: #{tpu_custom_call.1} parent=1 // pred_check
      _
    $region11: #{tpu_custom_call.1} parent=1 // pred_check_branch
      %37 = sbr.rel (0) target = $region13
    $region12: #{tpu_custom_call.1} parent=1 // pred_region
      %39 = dma.done [#allocation4], 256
    $region13: #{tpu_custom_call.1} parent=1 // pred_fallthru
      _
    // Predicated region
    $region14: #{tpu_custom_call.1} parent=1 // pred_check
      _
    $region15: #{tpu_custom_call.1} parent=1 // pred_check_branch
      %41 = sbr.rel (0) target = $region17
    $region16: #{tpu_custom_call.1} parent=1 // pred_region
      %43 = dma.done [#allocation7], 256
    $region17: #{tpu_custom_call.1} parent=1 // pred_fallthru
      _
    %p44 = scmp.eq.s32.totalorder 0, 0
    // Predicated region
    $region18: #{tpu_custom_call.1} parent=1 // pred_check
      %p45 = pneg %p44
    $region19: #{tpu_custom_call.1} parent=1 // pred_check_branch
      %47 = sbr.rel (%p45) target = $region21
    $region20: #{tpu_custom_call.1} parent=1 // pred_region
      %48 = vst [vmem:[#allocation2] sm:$0xff] 0.0
    $region21: #{tpu_custom_call.1} parent=1 // pred_fallthru
      _
    %v49 = vld [vmem:[#allocation3] sm:$0xff]
    %v50 = vld [vmem:[#allocation3 + $0x8] sm:$0xff]
    %v51 = vld [vmem:[#allocation6] sm:$0xff]
    %v52 = vld [vmem:[#allocation6 + $0x8] sm:$0xff]
    %v53 = vsub.f32 %v49, %v51
    %v54 = vsub.f32 %v50, %v52
    %v55 = vmul.f32 %v53, %v53
    %v56 = vmul.f32 %v54, %v54
    %s57 = sadd.s32 0, 1
    %s58 = smul.u32 %s57, 16
    %p59 = scmp.le.s32.totalorder %s58, 16
    // Predicated region
    $region22: #{tpu_custom_call.1} parent=1 // pred_check
      %p60 = pneg %p59
    $region23: #{tpu_custom_call.1} parent=1 // pred_check_branch
      %62 = sbr.rel (%p60) target = $region25
    $region24: #{tpu_custom_call.1} parent=1 // pred_region
      %v63 = vld [vmem:[#allocation2] sm:$0xff]
      %v64 = vadd.f32 %v55, %v56
      %v65 = vadd.f32 %v63, %v64
      %66 = vst [vmem:[#allocation2] sm:$0xff] %v65
    $region25: #{tpu_custom_call.1} parent=1 // pred_fallthru
      _
    %p67 = scmp.gt.s32.totalorder %s58, 16
    // Predicated region
    $region26: #{tpu_custom_call.1} parent=1 // pred_check
      %p68 = pneg %p67
    $region27: #{tpu_custom_call.1} parent=1 // pred_check_branch
      %70 = sbr.rel (%p68) target = $region29
    $region28: #{tpu_custom_call.1} parent=1 // pred_region
      %v71 = vlaneseq
      %v72 = vshrl.u32 %v71, 7
      %v73 = vadd.s32 %v72, 8
      %s74 = smul.u32 0, 16
      %v75 = vstv %s74
      %v76 = vadd.s32 %v72, %v75
      %v77 = vadd.s32 %v73, %v75
      %vm78 = vcmp.lt.s32.totalorder %v76, 16
      %vm79 = vcmp.lt.s32.totalorder %v77, 16
      %v80 = vsel %vm78, %v55, 0.0
      %v81 = vsel %vm79, %v56, 0.0
      %v82 = vld [vmem:[#allocation2] sm:$0xff]
      %v83 = vadd.f32 %v80, %v81
      %v84 = vadd.f32 %v82, %v83
      %85 = vst [vmem:[#allocation2] sm:$0xff] %v84
    $region29: #{tpu_custom_call.1} parent=1 // pred_fallthru
      _
    // Predicated region
    $region30: #{tpu_custom_call.1} parent=1 // pred_check
      %p86 = pneg %p44
    $region31: #{tpu_custom_call.1} parent=1 // pred_check_branch
      %88 = sbr.rel (%p86) target = $region33
    $region32: #{tpu_custom_call.1} parent=1 // pred_region
      %v89 = vld [vmem:[#allocation2] sm:$0xff]
      %90 = vst [vmem:[#allocation8] sm:$0xff] %v89
    $region33: #{tpu_custom_call.1} parent=1 // pred_fallthru
      _
    // Predicated region
    $region34: #{tpu_custom_call.1} parent=1 // pred_check
      _
    $region35: #{tpu_custom_call.1} parent=1 // pred_check_branch
      %92 = sbr.rel (0) target = $region37
    $region36: #{tpu_custom_call.1} parent=1 // pred_region
      %94 = vsyncadd [#allocation5], 0
      %s96 = sshll.u32 [#allocation8], 4
      %s97 = int_to_ptr.vmem [resolvable:$true] %s96
      %s98 = sshll.u32 %s2, 4
      %s99 = int_to_ptr.hbm [resolvable:$true] %s98
      %101 = dma.vmem_to_hbm [thread:$0]  %s97, 128, %s99, [#allocation5]
    $region37: #{tpu_custom_call.1} parent=1 // pred_fallthru
      _
    // Predicated region
    $region38: #{tpu_custom_call.1} parent=1 // pred_check
      _
    $region39: #{tpu_custom_call.1} parent=1 // pred_check_branch
      %103 = sbr.rel (0) target = $region41
    $region40: #{tpu_custom_call.1} parent=1 // pred_region
      %105 = dma.done [#allocation5], 128
    $region41: #{tpu_custom_call.1} parent=1 // pred_fallthru
      _
    %106 = vsyncpa [#allocation4], 1
    %107 = vsyncpa [#allocation7], 1
    %108 = vsyncpa [#allocation5], 1

</llo_original>
